<compile_context>
chip_gen: v7x
topology: tpu7x:2x2x1
jax: 0.10.0
libtpu: 0.0.40
codegen_flags: <defaults>
</compile_context>

<pallas_src>
import functools

import jax
import jax.numpy as jnp
from jax import lax
from jax.experimental import pallas as pl
from jax.experimental.pallas import tpu as pltpu
import numpy as np


def _round_up(x, m):
    return (x + m - 1) // m * m


def _angular_loss_kernel(lhs_ref, pos_t_ref, term2_ref, out_ref, *, tile_i, tile_j):
    i = pl.program_id(0)
    j = pl.program_id(1)

    # The output block (Ti, 128) is resident across the j (reduction) axis and acts
    # as the lane-dense row-sum accumulator.
    @pl.when(j == 0)
    def _init():
        out_ref[...] = jnp.zeros_like(out_ref)

    # MXU matmul in the input's native dtype, f32 accumulate.  RHS is pre-transposed
    # so it contracts on its sublane dim (no relayout before the MXU push).
    term1 = lax.dot_general(
        lhs_ref[...], pos_t_ref[...],
        dimension_numbers=(((1,), (0,)), ((), ())),
        preferred_element_type=jnp.float32)                        # (Ti, Tj) f32

    # term2 arrives lane-aligned as a (1, Tj) f32 strip -> broadcasts over rows.
    # (Padded columns carry +inf so exp() kills them exactly.)
    f = term1 - term2_ref[...]

    # Reference masks the global diagonal to 0 before exp (=> exp(0) = 1).
    r = i * tile_i + lax.broadcasted_iota(jnp.int32, f.shape, 0)
    c = j * tile_j + lax.broadcasted_iota(jnp.int32, f.shape, 1)
    f = jnp.where(r == c, 0.0, f)

    p = jnp.exp(f)                                                 # (Ti, Tj) f32, EUP

    # Lane-dense fold of the Tj lanes into 128 lanes (VPU adds only; the single
    # 128 -> 1 cross-lane reduce happens in the wrapper).
    acc = p[:, 0:128]
    for k in range(1, tile_j // 128):
        acc = acc + p[:, k * 128:(k + 1) * 128]
    out_ref[...] += acc


def angular_loss(embedding, label=None, *, margin=45.0):
    """Pallas TPU implementation of AngularLoss.forward.  Returns (loss, 0, 0)."""
    del label  # unused in the reference forward pass
    batch, dim = embedding.shape
    assert batch % 2 == 0, "AngularLoss needs an even batch (anchor/positive pairs)."
    n_pairs = batch // 2

    # scalar coefficient: tan(deg2rad(margin))**2, computed in float32 like torch
    alpha = np.deg2rad(np.float32(margin))
    sq_tan_alpha = float(np.tan(alpha, dtype=np.float32) ** 2)
    scale = 4.0 * sq_tan_alpha

    anchor = embedding[:n_pairs]
    pos = embedding[n_pairs:]
    a32 = anchor.astype(jnp.float32)
    p32 = pos.astype(jnp.float32)

    # One-time O(n*d) wrapper precomputes (vs. O(n^2*d) in-kernel savings):
    #   lhs   = 4*tan^2(alpha) * (anchor + pos), fed in the MXU-native dtype
    #   pos_T = pos transposed so the RHS contracts on its sublane dim
    #   term2 = 2*(1+tan^2(alpha)) * <anchor, pos>, lane-aligned f32 strip
    lhs = (scale * (a32 + p32)).astype(embedding.dtype)            # (n_pairs, d)
    pos_t = pos.T                                                  # (d, n_pairs)
    term2 = 2.0 * (1.0 + sq_tan_alpha) * jnp.sum(a32 * p32, axis=1)

    # --- tiling -------------------------------------------------------------
    # Column tile: 256 keeps the 2x256^2 MXU fed; padded to a multiple of 128.
    tj = 256 if n_pairs >= 256 else max(128, _round_up(n_pairs, 128))
    # Row tile: up to 512 to cut pos_T re-streaming, but always aim for >= 2 row
    # blocks so v7x megacore can shard the "parallel" i axis across both cores.
    if n_pairs >= 16:
        ti = min(512, max(8, _round_up((n_pairs + 1) // 2, 8)))
    else:
        ti = max(8, _round_up(n_pairs, 8))

    itemsize = jnp.dtype(embedding.dtype).itemsize

    def _vmem_est(ti_, tj_):
        return (2 * (ti_ * dim + dim * tj_ + tj_) * itemsize       # double-buffered inputs
                + 2 * ti_ * 128 * 4                                # resident output acc
                + 4 * ti_ * tj_ * 4                                # f / exp intermediates
                + (8 << 10))                                       # slack

    # Keep well inside v7x's 64 MiB VMEM for large embedding dims.
    # TODO(synk): for very large dim (>~8K) add a K (dim) grid axis with an f32
    # term1 accumulator instead of shrinking tiles.
    while _vmem_est(ti, tj) > (40 << 20) and ti > 64:
        ti = max(64, _round_up(ti // 2, 8))
    while _vmem_est(ti, tj) > (40 << 20) and tj > 128:
        tj = max(128, tj // 2)

    n_pad_row = _round_up(n_pairs, ti)
    n_pad_col = _round_up(n_pairs, tj)
    n_row_blocks = n_pad_row // ti
    n_col_blocks = n_pad_col // tj

    # Padding: zero rows/cols in the panels; +inf sentinel in term2 makes padded
    # columns contribute exp(-inf) = 0.  Padded rows are sliced away before the log.
    lhs = jnp.pad(lhs, ((0, n_pad_row - n_pairs), (0, 0)))
    pos_t = jnp.pad(pos_t, ((0, 0), (0, n_pad_col - n_pairs)))
    term2_row = jnp.pad(term2.reshape(1, n_pairs),
                        ((0, 0), (0, n_pad_col - n_pairs)),
                        constant_values=jnp.inf)

    vmem_limit = int(min(max(_vmem_est(ti, tj), 32 << 20), 48 << 20))

    cost = pl.CostEstimate(
        flops=int(2 * n_pad_row * n_pad_col * dim + 6 * n_pad_row * n_pad_col),
        transcendentals=int(n_pad_row * n_pad_col),
        bytes_accessed=int(n_pad_row * dim * itemsize                       # lhs (once/row block)
                           + n_row_blocks * n_pad_col * dim * itemsize      # pos_T re-streamed
                           + n_row_blocks * n_pad_col * 4                   # term2 strip
                           + n_pad_row * 128 * 4),                          # lane-dense output
    )

    kernel = functools.partial(_angular_loss_kernel, tile_i=ti, tile_j=tj)

    rowsum_lanes = pl.pallas_call(
        kernel,
        out_shape=jax.ShapeDtypeStruct((n_pad_row, 128), jnp.float32),
        grid=(n_row_blocks, n_col_blocks),
        in_specs=[
            pl.BlockSpec((ti, dim), lambda i, j: (i, 0)),     # lhs rows, block i (resident over j)
            pl.BlockSpec((dim, tj), lambda i, j: (0, j)),     # pos^T cols, block j
            pl.BlockSpec((1, tj), lambda i, j: (0, j)),       # term2 strip, block j
        ],
        out_specs=pl.BlockSpec((ti, 128), lambda i, j: (i, 0)),
        compiler_params=pltpu.CompilerParams(
            dimension_semantics=("parallel", "arbitrary"),
            vmem_limit_bytes=vmem_limit),
        cost_estimate=cost,
    )(lhs, pos_t, term2_row)

    # Tiny O(n) epilogue: 128 -> 1 lane reduce, drop padded rows, log, mean.
    rowsum = jnp.sum(rowsum_lanes[:n_pairs], axis=1)
    loss = jnp.mean(jnp.log(rowsum))
    return loss, 0, 0


def _reference(embedding, margin=45.0):
    # pure-JAX reference mirroring the torch code exactly
    batch = embedding.shape[0]
    n = batch // 2
    a = embedding[:n].astype(jnp.float32)
    p = embedding[n:batch].astype(jnp.float32)
    sq = jnp.float32(np.tan(np.deg2rad(np.float32(margin)), dtype=np.float32) ** 2)
    term1 = 4.0 * sq * (a + p) @ p.T
    term2 = 2.0 * (1.0 + sq) * jnp.sum(p * a, axis=1)
    f = term1 - term2[None, :]
    mask = jnp.ones((n, n), jnp.float32) - jnp.eye(n, dtype=jnp.float32)
    f = f * mask
    return jnp.mean(jnp.log(jnp.sum(jnp.exp(f), axis=1)))


if __name__ == "__main__":
    key = jax.random.PRNGKey(0)
    k1, k2, k3 = jax.random.split(key, 3)

    # 1) Small, padded-path test (n_pairs=4 -> one (8, 128) tile; padded rows + cols).
    emb_small = 0.1 * jax.random.normal(k1, (8, 32), dtype=jnp.float32)
    label = jnp.zeros((8,), jnp.int32)  # unused by the loss
    loss, z0, z1 = angular_loss(emb_small, label, margin=45.0)
    loss = jax.block_until_ready(loss)
    ref = jax.block_until_ready(_reference(emb_small, margin=45.0))
    assert np.allclose(np.asarray(loss), np.asarray(ref), rtol=1e-3, atol=1e-3), (loss, ref)
    assert z0 == 0 and z1 == 0

    # 2) Tile-aligned, multi-block test (n_pairs=512 -> 2x2 grid of (256, 256) tiles,
    #    two row blocks for the parallel axis).
    emb_big = 0.05 * jax.random.normal(k2, (1024, 128), dtype=jnp.float32)
    loss2, _, _ = angular_loss(emb_big, None, margin=45.0)
    loss2 = jax.block_until_ready(loss2)
    ref2 = jax.block_until_ready(_reference(emb_big, margin=45.0))
    assert np.allclose(np.asarray(loss2), np.asarray(ref2), rtol=1e-3, atol=1e-3), (loss2, ref2)

    # 3) Ragged, multi-block test (n_pairs=300 -> (152, 256) tiles, padded rows and
    #    columns, diagonal crossing rectangular tile boundaries).
    emb_rag = 0.05 * jax.random.normal(k3, (600, 64), dtype=jnp.float32)
    loss3, _, _ = angular_loss(emb_rag, None, margin=45.0)
    loss3 = jax.block_until_ready(loss3)
    ref3 = jax.block_until_ready(_reference(emb_rag, margin=45.0))
    assert np.allclose(np.asarray(loss3), np.asarray(ref3), rtol=1e-3, atol=1e-3), (loss3, ref3)

    print("KERNEL_OK")
</pallas_src>

<mosaic_0001>
module attributes {stable_mosaic.version = 11 : i64} {
  func.func @_angular_loss_kernel(%arg0: i32, %arg1: i32, %arg2: memref<8x32xf32, #tpu.memory_space<vmem>>, %arg3: memref<32x128xf32, #tpu.memory_space<vmem>>, %arg4: memref<1x128xf32, #tpu.memory_space<vmem>>, %arg5: memref<8x128xf32, #tpu.memory_space<vmem>>) attributes {dimension_semantics = [#tpu.dimension_semantics<parallel>, #tpu.dimension_semantics<arbitrary>], iteration_bounds = array<i64: 1, 1>, scalar_prefetch = 0 : i64, scratch_operands = 0 : i64, tpu.core_type = #tpu.core_type<tc>, window_params = [{transform_indices = @transform_0, window_bounds = array<i64: 8, 32>}, {transform_indices = @transform_1, window_bounds = array<i64: 32, 128>}, {transform_indices = @transform_2, window_bounds = array<i64: 1, 128>}, {transform_indices = @transform_3, window_bounds = array<i64: 8, 128>}]} {
    %c0_i32 = arith.constant 0 : i32
    %0 = arith.cmpi eq, %arg1, %c0_i32 : i32
    %1 = arith.extui %0 : i1 to i32
    %c0_i32_0 = arith.constant 0 : i32
    %2 = arith.cmpi ne, %1, %c0_i32_0 : i32
    scf.if %2 {
      %cst_11 = arith.constant 0.000000e+00 : f32
      %24 = vector.broadcast %cst_11 : f32 to vector<8x128xf32>
      %c0_12 = arith.constant 0 : index
      %c0_13 = arith.constant 0 : index
      %25 = vector.load %arg5[%c0_12, %c0_13] : memref<8x128xf32, #tpu.memory_space<vmem>>, vector<8x128xf32>
      tpu.vector_store %arg5[%c0_12, %c0_13], %24 {strides = array<i32>} : memref<8x128xf32, #tpu.memory_space<vmem>>, vector<8x128xf32>,
    } else {
    }
    %c0 = arith.constant 0 : index
    %c0_1 = arith.constant 0 : index
    %3 = vector.load %arg2[%c0, %c0_1] : memref<8x32xf32, #tpu.memory_space<vmem>>, vector<8x32xf32>
    %c0_2 = arith.constant 0 : index
    %c0_3 = arith.constant 0 : index
    %4 = vector.load %arg3[%c0_2, %c0_3] : memref<32x128xf32, #tpu.memory_space<vmem>>, vector<32x128xf32>
    %cst = arith.constant dense<0.000000e+00> : vector<8x128xf32>
    %5 = tpu.matmul %3, %4, %cst {dimension_numbers = #tpu.dot_dimension_numbers<[1], [0], [0], [1], [0, 0, 1, 1], [], []>} : vector<8x32xf32>, vector<32x128xf32>, vector<8x128xf32> -> vector<8x128xf32>
    %c0_4 = arith.constant 0 : index
    %c0_5 = arith.constant 0 : index
    %6 = vector.load %arg4[%c0_4, %c0_5] : memref<1x128xf32, #tpu.memory_space<vmem>>, vector<1x128xf32>
    %7 = vector.broadcast %6 : vector<1x128xf32> to vector<8x128xf32>
    %8 = arith.subf %5, %7 : vector<8x128xf32>
    %c8_i32 = arith.constant 8 : i32
    %9 = arith.muli %arg0, %c8_i32 : i32
    %10 = tpu.iota {dimensions = array<i32: 0>} : vector<8x128xi32>
    %11 = vector.broadcast %9 : i32 to vector<8x128xi32>
    %12 = arith.addi %11, %10 : vector<8x128xi32>
    %c128_i32 = arith.constant 128 : i32
    %13 = arith.muli %arg1, %c128_i32 : i32
    %14 = tpu.iota {dimensions = array<i32: 1>} : vector<8x128xi32>
    %15 = vector.broadcast %13 : i32 to vector<8x128xi32>
    %16 = arith.addi %15, %14 : vector<8x128xi32>
    %17 = arith.cmpi eq, %12, %16 : vector<8x128xi32>
    %cst_6 = arith.constant 0.000000e+00 : f32
    %18 = vector.broadcast %cst_6 : f32 to vector<8x128xf32>
    %19 = arith.select %17, %18, %8 : vector<8x128xi1>, vector<8x128xf32>
    %20 = math.exp %19 : vector<8x128xf32>
    %c0_7 = arith.constant 0 : index
    %c0_8 = arith.constant 0 : index
    %21 = vector.load %arg5[%c0_7, %c0_8] : memref<8x128xf32, #tpu.memory_space<vmem>>, vector<8x128xf32>
    %22 = arith.addf %21, %20 : vector<8x128xf32>
    %c0_9 = arith.constant 0 : index
    %c0_10 = arith.constant 0 : index
    %23 = vector.load %arg5[%c0_9, %c0_10] : memref<8x128xf32, #tpu.memory_space<vmem>>, vector<8x128xf32>
    tpu.vector_store %arg5[%c0_9, %c0_10], %22 {strides = array<i32>} : memref<8x128xf32, #tpu.memory_space<vmem>>, vector<8x128xf32>,
    return
  }
  func.func @transform_0(%arg0: i32, %arg1: i32) -> (i32, i32) {
    %c0_i32 = arith.constant 0 : i32
    %c0_i32_0 = arith.constant 0 : i32
    return %arg0, %c0_i32 : i32, i32
  }
  func.func @transform_1(%arg0: i32, %arg1: i32) -> (i32, i32) {
    %c0_i32 = arith.constant 0 : i32
    %c0_i32_0 = arith.constant 0 : i32
    return %c0_i32, %arg1 : i32, i32
  }
  func.func @transform_2(%arg0: i32, %arg1: i32) -> (i32, i32) {
    %c0_i32 = arith.constant 0 : i32
    %c0_i32_0 = arith.constant 0 : i32
    return %c0_i32, %arg1 : i32, i32
  }
  func.func @transform_3(%arg0: i32, %arg1: i32) -> (i32, i32) {
    %c0_i32 = arith.constant 0 : i32
    %c0_i32_0 = arith.constant 0 : i32
    return %arg0, %c0_i32 : i32, i32
  }
}

</mosaic_0001>

<llo_original>
// kernel: tpu_custom_call.1
$region0: #{tpu_custom_call.1}
  #allocation0 [shape = 'u32[]', space=smem, size = 0x4, offset = 0x4, fixed_abs, tag = 'smem constant byte address 0x4 - core index']
  #allocation1 [shape = 'u32[144,128]{1,0:T(1,128)}', space=vmem, size = 0x12000, scoped, tag = 'internal scratch']
  %s0 = inlined_call_operand.hbm [shape: f32[8,32], index: 0, kind: input, shape index: {}]
  %s1 = inlined_call_operand.hbm [shape: f32[32,128], index: 1, kind: input, shape index: {}]
  %s2 = inlined_call_operand.vmem [shape: f32[1,128], index: 2, kind: input, shape index: {}]
  %s3 = inlined_call_operand.hbm [shape: f32[8,128], index: 3, kind: output, shape index: {}]
  %s4 = sld [smem:[#allocation0]]
  $region34: #{tpu_custom_call.1} parent=0
    _
  %s6 = ssub.s32 1, %s4
  %s7 = scalar_select 0, %s6, %s4
  $region1: #{tpu_custom_call.1} parent=0
    #allocation2 [shape = 'u8[4096]{0}', space=vmem, size = 0x1000, scoped, tag = 'input window, operand 0, single buffered']
    #allocation3 [shape = 's32[1]{0}', space=sflag, size = 0x4, scoped, tag = 'scoped memory for tpu_custom_call.1']
    #allocation4 [shape = 's32[1]{0}', space=sflag, size = 0x4, scoped, tag = 'scoped memory for tpu_custom_call.1']
    #allocation5 [shape = 'u8[16384]{0}', space=vmem, size = 0x4000, scoped, tag = 'input window, operand 1, single buffered']
    #allocation6 [shape = 's32[1]{0}', space=sflag, size = 0x4, scoped, tag = 'scoped memory for tpu_custom_call.1']
    #allocation7 [shape = 'u8[4096]{0}', space=vmem, size = 0x1000, scoped, tag = 'output window, operand 0, single buffered']
    %8 = vsyncpa [#allocation3], 0
    %9 = vsyncpa [#allocation6], 0
    %10 = vsyncpa [#allocation4], 0
    // Predicated region
    $region2: #{tpu_custom_call.1} parent=1 // pred_check
      _
    $region3: #{tpu_custom_call.1} parent=1 // pred_check_branch
      %12 = sbr.rel (0) target = $region5
    $region4: #{tpu_custom_call.1} parent=1 // pred_region
      %s14 = ssub.s32 128, 128
      %15 = vsyncadd [#allocation3], %s14
      %s17 = sshll.u32 [#allocation2], 4
      %s18 = int_to_ptr.vmem [resolvable:$true] %s17
      %20 = dma.hbm_to_vmem [thread:$0]  %s0, 128, %s18, [#allocation3]
    $region5: #{tpu_custom_call.1} parent=1 // pred_fallthru
      _
    // Predicated region
    $region6: #{tpu_custom_call.1} parent=1 // pred_check
      _
    $region7: #{tpu_custom_call.1} parent=1 // pred_check_branch
      %22 = sbr.rel (0) target = $region9
    $region8: #{tpu_custom_call.1} parent=1 // pred_region
      %s24 = ssub.s32 512, 512
      %25 = vsyncadd [#allocation6], %s24
      %s26 = sshll.u32 [#allocation5], 4
      %s27 = int_to_ptr.vmem [resolvable:$true] %s26
      %32 = dma.hbm_to_vmem [thread:$0]  %s1, 512, %s27, [#allocation6], 128, 128, 8
    $region9: #{tpu_custom_call.1} parent=1 // pred_fallthru
      _
    // Predicated region
    $region10: #{tpu_custom_call.1} parent=1 // pred_check
      _
    $region11: #{tpu_custom_call.1} parent=1 // pred_check_branch
      %34 = sbr.rel (0) target = $region13
    $region12: #{tpu_custom_call.1} parent=1 // pred_region
      _
    $region13: #{tpu_custom_call.1} parent=1 // pred_fallthru
      _
    // Predicated region
    $region14: #{tpu_custom_call.1} parent=1 // pred_check
      _
    $region15: #{tpu_custom_call.1} parent=1 // pred_check_branch
      %36 = sbr.rel (0) target = $region17
    $region16: #{tpu_custom_call.1} parent=1 // pred_region
      %37 = dma.done [#allocation3], 128
    $region17: #{tpu_custom_call.1} parent=1 // pred_fallthru
      _
    // Predicated region
    $region18: #{tpu_custom_call.1} parent=1 // pred_check
      _
    $region19: #{tpu_custom_call.1} parent=1 // pred_check_branch
      %39 = sbr.rel (0) target = $region21
    $region20: #{tpu_custom_call.1} parent=1 // pred_region
      %40 = dma.done [#allocation6], 512
    $region21: #{tpu_custom_call.1} parent=1 // pred_fallthru
      _
    %p41 = scmp.eq.s32.totalorder 0, 0
    // Predicated region
    $region22: #{tpu_custom_call.1} parent=1 // pred_check
      %p42 = pneg %p41
    $region23: #{tpu_custom_call.1} parent=1 // pred_check_branch
      %44 = sbr.rel (%p42) target = $region25
    $region24: #{tpu_custom_call.1} parent=1 // pred_region
      %45 = vst [vmem:[#allocation7] sm:$0xff] 0.0
    $region25: #{tpu_custom_call.1} parent=1 // pred_fallthru
      _
    %v46 = vld [vmem:[#allocation2] sm:$0xff]
    %v47 = vld [vmem:[#allocation5] sm:$0xff]
    %v48 = vld [vmem:[#allocation5 + $0x8] sm:$0xff]
    %v49 = vld [vmem:[#allocation5 + $0x10] sm:$0xff]
    %v50 = vld [vmem:[#allocation5 + $0x18] sm:$0xff]
    %vm51 = vcmask 261120
    %v53 = vsel %vm51, %v46, 0
    %55 = vmatprep.subr.mxu0 0.0
    %56 = vmatpush1.msra.mxu0 %v47
    %57 = vmatprep.subr.mxu0 0.0
    %58 = vmatpush1.msra.mxu0 %v48
    %59 = vmatprep.subr.mxu0 0.0
    %60 = vmatpush1.msra.mxu0 %v49
    %61 = vmatprep.subr.mxu0 0.0
    %62 = vmatpush1.msra.mxu0 %v50
    %63 = vmatprep.subr.mxu0 0.0
    %64 = vmatpush1.msra.mxu0 0.0
    %65 = vmatprep.subr.mxu0 0.0
    %66 = vmatpush1.msra.mxu0 0.0
    %67 = vmatprep.subr.mxu0 0.0
    %68 = vmatpush1.msra.mxu0 0.0
    %69 = vmatprep.subr.mxu0 0.0
    %70 = vmatpush1.msra.mxu0 0.0
    %71 = vmatprep.subr.mxu0 0.0
    %72 = vmatpush1.msra.mxu0 0.0
    %73 = vmatprep.subr.mxu0 0.0
    %74 = vmatpush1.msra.mxu0 0.0
    %75 = vmatprep.subr.mxu0 0.0
    %76 = vmatpush1.msra.mxu0 0.0
    %77 = vmatprep.subr.mxu0 0.0
    %78 = vmatpush1.msra.mxu0 0.0
    %79 = vmatprep.subr.mxu0 0.0
    %80 = vmatpush1.msra.mxu0 0.0
    %81 = vmatprep.subr.mxu0 0.0
    %82 = vmatpush1.msra.mxu0 0.0
    %83 = vmatprep.subr.mxu0 0.0
    %84 = vmatpush1.msra.mxu0 0.0
    %85 = vmatprep.subr.mxu0 0.0
    %86 = vmatpush1.msra.mxu0 0.0
    %87 = vmatprep.subr.mxu0 0.0
    %88 = vmatpush1.msra.mxu0 0.0
    %89 = vmatprep.subr.mxu0 0.0
    %90 = vmatpush1.msra.mxu0 0.0
    %91 = vmatprep.subr.mxu0 0.0
    %92 = vmatpush1.msra.mxu0 0.0
    %93 = vmatprep.subr.mxu0 0.0
    %94 = vmatpush1.msra.mxu0 0.0
    %95 = vmatprep.subr.mxu0 0.0
    %96 = vmatpush1.msra.mxu0 0.0
    %97 = vmatprep.subr.mxu0 0.0
    %98 = vmatpush1.msra.mxu0 0.0
    %99 = vmatprep.subr.mxu0 0.0
    %100 = vmatpush1.msra.mxu0 0.0
    %101 = vmatprep.subr.mxu0 0.0
    %102 = vmatpush1.msra.mxu0 0.0
    %103 = vmatprep.subr.mxu0 0.0
    %104 = vmatpush1.msra.mxu0 0.0
    %105 = vmatprep.subr.mxu0 0.0
    %106 = vmatpush1.msra.mxu0 0.0
    %107 = vmatprep.subr.mxu0 0.0
    %108 = vmatpush1.msra.mxu0 0.0
    %109 = vmatprep.subr.mxu0 0.0
    %110 = vmatpush1.msra.mxu0 0.0
    %111 = vmatprep.subr.mxu0 0.0
    %112 = vmatpush1.msra.mxu0 0.0
    %113 = vmatprep.subr.mxu0 0.0
    %114 = vmatpush1.msra.mxu0 0.0
    %115 = vmatprep.subr.mxu0 0.0
    %116 = vmatpush1.msra.mxu0 0.0
    %117 = vmatprep.subr.mxu0 0.0
    %118 = vmatpush1.msra.mxu0 0.0
    %119 = vmatprep.mubr.f32.mxu0 0.0
    %120 = vmatmul.mubr.f32.gmra.mrb[0].mxu0 %v53
    %v121 = vpop.f32.mrb[0].mxu0
    %v122 = vadd.f32 0.0, %v121
    %v123 = vpop.f32.mrb[0].mxu0
    %124 = vdwg.mxu0
    %v125 = vld [vmem:[%s2] sm:$0x1]
    %v127 = vlaneseq
    %v128 = vshrl.u32 %v127, 7
    %v129 = vsub.s32 0, %v128
    %v130 = vrot.slane %v125, %v129
    %v132 = vsub.f32 %v122, %v130
    %s133 = smul.u32 0, 8
    %v134 = vlaneseq
    %v135 = vshrl.u32 %v134, 7
    %v136 = vstv %s133
    %v137 = vadd.s32 %v136, %v135
    %s138 = smul.u32 0, 128
    %v139 = vlaneseq
    %v140 = vand.u32 %v139, 127
    %v141 = vstv %s138
    %v142 = vadd.s32 %v141, %v140
    %vm143 = vcmp.eq.s32.totalorder %v137, %v142
    %v144 = vsel %vm143, 0.0, %v132
    %v145 = vmul.f32 %v144, 1.442695
    %v146 = vpow.pop %v145
    %v147 = vld [vmem:[#allocation7] sm:$0xff]
    %v148 = vadd.f32 %v147, %v146
    %149 = vst [vmem:[#allocation7] sm:$0xff] %v148
    // Predicated region
    $region26: #{tpu_custom_call.1} parent=1 // pred_check
      _
    $region27: #{tpu_custom_call.1} parent=1 // pred_check_branch
      %151 = sbr.rel (0) target = $region29
    $region28: #{tpu_custom_call.1} parent=1 // pred_region
      %s153 = ssub.s32 128, 128
      %154 = vsyncadd [#allocation4], %s153
      %s156 = sshll.u32 [#allocation7], 4
      %s157 = int_to_ptr.vmem [resolvable:$true] %s156
      %159 = dma.vmem_to_hbm [thread:$0]  %s157, 128, %s3, [#allocation4]
    $region29: #{tpu_custom_call.1} parent=1 // pred_fallthru
      _
    // Predicated region
    $region30: #{tpu_custom_call.1} parent=1 // pred_check
      _
    $region31: #{tpu_custom_call.1} parent=1 // pred_check_branch
      %161 = sbr.rel (0) target = $region33
    $region32: #{tpu_custom_call.1} parent=1 // pred_region
      %162 = dma.done [#allocation4], 128
    $region33: #{tpu_custom_call.1} parent=1 // pred_fallthru
      _
    %163 = vsyncpa [#allocation3], 1
    %164 = vsyncpa [#allocation6], 1
    %165 = vsyncpa [#allocation4], 1

</llo_original>
